<compile_context>
chip_gen: v7x
topology: tpu7x:2x2x1
jax: 0.10.0
libtpu: 0.0.40
codegen_flags: <defaults>
</compile_context>

<pallas_src>
import functools

import jax
import jax.numpy as jnp
from jax.experimental import pallas as pl
from jax.experimental.pallas import tpu as pltpu


def _monotonic_flow_kernel(snr_ref, w_ref, th_ref, out_ref, *,
                           num_basis, min_snr, max_snr, min_flow, max_flow,
                           use_bf16_basis):
    """flow[l, b] = min_flow + (1 - sum_k w[l,k] * sigmoid((x[b] - theta[l,k]) * NB))
                               * (max_flow - min_flow)

    snr_ref : (1, TB)  f32  raw SNR in dB (batch on lanes)
    w_ref   : (L, NB)  f32  precomputed softmax weights per layer (VMEM-resident)
    th_ref  : (L, NB)  f32  precomputed thetas per layer          (VMEM-resident)
    out_ref : (L, TB)  f32  per-layer flow speeds, lane-dense
    """
    nb = float(num_basis)
    x = (snr_ref[...] - min_snr) * (1.0 / (max_snr - min_snr))            # (1, TB)

    weights = w_ref[...]                                                  # (L, NB)
    thetas = th_ref[...]                                                  # (L, NB)

    # Pre-activation for the basis sigmoids: z = (x - theta) * NB.
    # Fold the 0.5 of sigmoid(z) = 0.5*tanh(0.5*z) + 0.5 into the scale so the
    # EUP sees exactly one tanh per element.
    z = (x[None, :, :] - thetas[:, :, None]) * (0.5 * nb)                 # (L, NB, TB)

    if use_bf16_basis:
        # v6e/v7x only: bf16 EUP (~2x throughput, half the intermediate bytes).
        t = jnp.tanh(z.astype(jnp.bfloat16)).astype(jnp.float32)
    else:
        t = jnp.tanh(z)

    basis = 0.5 * t + 0.5                                                 # sigmoid(NB*(x-theta))
    mono = jnp.sum(weights[:, :, None] * basis, axis=1)                   # (L, TB)

    flow = min_flow + (1.0 - mono) * (max_flow - min_flow)
    out_ref[...] = flow.astype(out_ref.dtype)


def _choose_tile_b(B, L, NB, tile_b):
    """Pick a lane-multiple batch tile: big enough to amortize grid-step overhead,
    small enough that ~3 live f32 (L, NB, tile_b) intermediates stay under ~4 MiB
    (safe under v7x's 32 MiB default scoped VMEM even with double-buffered I/O)."""
    vmem_budget = 4 * 1024 * 1024
    cap = vmem_budget // max(1, 3 * L * NB * 4)
    cap = max(128, (cap // 128) * 128)
    tile_b = max(128, (int(tile_b) // 128) * 128)
    tile_b = min(tile_b, cap)
    b_pad_min = pl.cdiv(B, 128) * 128
    tile_b = min(tile_b, b_pad_min)
    b_pad = pl.cdiv(B, tile_b) * tile_b
    return tile_b, b_pad


def monotonic_flow_predict(snr_db, weight_logits, theta_raw, *,
                           min_snr=0.0, max_snr=20.0,
                           min_flow=0.0, max_flow=1.0,
                           tile_b=4096,
                           use_bf16_basis=False):
    """snr_db: (B,) f32; weight_logits/theta_raw: (L, NB) f32 -> flow (B, L) f32.

    For the module's per_layer=False case, pass (1, NB) parameters and squeeze
    the layer axis of the result.
    """
    B = snr_db.shape[0]
    L, NB = weight_logits.shape

    tile_b, b_pad = _choose_tile_b(B, L, NB, tile_b)
    grid = (b_pad // tile_b,)

    # Batch on lanes: pad B up to the tile multiple.
    snr_row = jnp.pad(snr_db.astype(jnp.float32).reshape(1, B),
                      ((0, 0), (0, b_pad - B)))

    # Batch-independent parameter transforms, hoisted out of the kernel and
    # computed with exact division (weights sum to 1, flow stays in range).
    weights = jax.nn.softmax(weight_logits.astype(jnp.float32), axis=-1)     # (L, NB)
    thetas = (jax.nn.sigmoid(theta_raw.astype(jnp.float32))
              * (1.0 + 10.0 / NB) - 5.0 / NB)                                # (L, NB)

    kernel = functools.partial(
        _monotonic_flow_kernel,
        num_basis=NB, min_snr=float(min_snr), max_snr=float(max_snr),
        min_flow=float(min_flow), max_flow=float(max_flow),
        use_bf16_basis=bool(use_bf16_basis))

    out_lb = pl.pallas_call(
        kernel,
        out_shape=jax.ShapeDtypeStruct((L, b_pad), jnp.float32),
        grid=grid,
        in_specs=[
            pl.BlockSpec((1, tile_b), lambda i: (0, i)),   # snr: new batch tile each step
            pl.BlockSpec((L, NB), lambda i: (0, 0)),       # weights: resident across grid
            pl.BlockSpec((L, NB), lambda i: (0, 0)),       # thetas:  resident across grid
        ],
        out_specs=pl.BlockSpec((L, tile_b), lambda i: (0, i)),  # lane-dense output
        compiler_params=pltpu.CompilerParams(
            # v7x: batch tiles may be sharded across the 2 TensorCores; if a
            # bundle dump shows this is a no-op, switch to pltpu.CORE_PARALLEL.
            dimension_semantics=("parallel",)),
    )(snr_row, weights, thetas)

    # Back to the module's (B, L) layout; drop lane padding.
    # TODO(synk): for very large B, return (L, B) / fuse the transpose into the
    # consumer to avoid an extra HBM pass (low priority; kernel is EUP-bound).
    return out_lb[:, :B].T


def init_params(num_layers, num_basis):
    """Deterministic init matching MonotonicBasis.__init__ (replicated per layer)."""
    weight_logits = jnp.zeros((num_layers, num_basis), jnp.float32)
    i = jnp.arange(num_basis, dtype=jnp.float32)
    initial_thetas = 1.0 / (2 * num_basis) + i / num_basis
    p = (initial_thetas + 5.0 / num_basis) / (1.0 + 10.0 / num_basis)
    theta_raw_row = jnp.log(p) - jnp.log1p(-p)            # logit
    theta_raw = jnp.broadcast_to(theta_raw_row, (num_layers, num_basis)).astype(jnp.float32)
    return weight_logits, theta_raw


def reference(snr_db, weight_logits, theta_raw, *,
              min_snr=0.0, max_snr=20.0, min_flow=0.0, max_flow=1.0):
    NB = weight_logits.shape[-1]
    x = (snr_db - min_snr) / (max_snr - min_snr)
    weights = jax.nn.softmax(weight_logits, axis=-1)
    thetas = jax.nn.sigmoid(theta_raw) * (1 + 10.0 / NB) - 5.0 / NB
    basis = jax.nn.sigmoid((x[:, None, None] - thetas[None]) * NB)
    mono = jnp.sum(weights[None] * basis, axis=-1)
    flow = 1.0 - mono
    return min_flow + flow * (max_flow - min_flow)


if __name__ == "__main__":
    key = jax.random.PRNGKey(0)
    batch = 8
    num_layers = 4
    num_basis = 8

    k_snr, k_wl, k_th = jax.random.split(key, 3)
    # SNR values in [0, 20] dB.
    snr_db = jax.random.uniform(k_snr, (batch,), jnp.float32, minval=0.0, maxval=20.0)
    # Module init plus small perturbations so the per-layer path is exercised.
    wl0, th0 = init_params(num_layers, num_basis)
    weight_logits = wl0 + 0.3 * jax.random.normal(k_wl, wl0.shape, jnp.float32)
    theta_raw = th0 + 0.1 * jax.random.normal(k_th, th0.shape, jnp.float32)

    # per_layer=True path: (B, L) flows.
    flow = monotonic_flow_predict(snr_db, weight_logits, theta_raw,
                                  min_snr=0.0, max_snr=20.0,
                                  min_flow=0.0, max_flow=1.0)
    flow = jax.block_until_ready(flow)
    ref = reference(snr_db, weight_logits, theta_raw)
    assert flow.shape == (batch, num_layers)
    assert jnp.allclose(flow, ref, atol=1e-5, rtol=1e-5), \
        float(jnp.max(jnp.abs(flow - ref)))
    # Monotone range guarantee holds now that the softmax is exact.
    assert float(jnp.min(flow)) >= 0.0 - 1e-6 and float(jnp.max(flow)) <= 1.0 + 1e-6

    # per_layer=False path: a single (1, NB) basis, squeeze the layer axis.
    flow1 = monotonic_flow_predict(snr_db, weight_logits[:1], theta_raw[:1])[:, 0]
    flow1 = jax.block_until_ready(flow1)
    ref1 = reference(snr_db, weight_logits[:1], theta_raw[:1])[:, 0]
    assert flow1.shape == (batch,)
    assert jnp.allclose(flow1, ref1, atol=1e-5, rtol=1e-5), \
        float(jnp.max(jnp.abs(flow1 - ref1)))

    print("KERNEL_OK")
</pallas_src>

<mosaic_0001>
module attributes {stable_mosaic.version = 11 : i64} {
  func.func @_monotonic_flow_kernel(%arg0: i32, %arg1: memref<1x128xf32, #tpu.memory_space<vmem>>, %arg2: memref<4x8xf32, #tpu.memory_space<vmem>>, %arg3: memref<4x8xf32, #tpu.memory_space<vmem>>, %arg4: memref<4x128xf32, #tpu.memory_space<vmem>>) attributes {dimension_semantics = [#tpu.dimension_semantics<parallel>], iteration_bounds = array<i64: 1>, scalar_prefetch = 0 : i64, scratch_operands = 0 : i64, tpu.core_type = #tpu.core_type<tc>, window_params = [{transform_indices = @transform_0, window_bounds = array<i64: 1, 128>}, {pipeline_mode = #tpu.pipeline_mode<synchronous>, transform_indices = @transform_1, window_bounds = array<i64: 4, 8>}, {pipeline_mode = #tpu.pipeline_mode<synchronous>, transform_indices = @transform_2, window_bounds = array<i64: 4, 8>}, {transform_indices = @transform_3, window_bounds = array<i64: 4, 128>}]} {
    %c0 = arith.constant 0 : index
    %c0_0 = arith.constant 0 : index
    %0 = vector.load %arg1[%c0, %c0_0] : memref<1x128xf32, #tpu.memory_space<vmem>>, vector<1x128xf32>
    %cst = arith.constant 0.000000e+00 : f32
    %1 = vector.broadcast %cst : f32 to vector<1x128xf32>
    %2 = arith.subf %0, %1 : vector<1x128xf32>
    %cst_1 = arith.constant 5.000000e-02 : f32
    %3 = vector.broadcast %cst_1 : f32 to vector<1x128xf32>
    %4 = arith.mulf %2, %3 : vector<1x128xf32>
    %c0_2 = arith.constant 0 : index
    %c0_3 = arith.constant 0 : index
    %5 = vector.load %arg2[%c0_2, %c0_3] : memref<4x8xf32, #tpu.memory_space<vmem>>, vector<4x8xf32>
    %c0_4 = arith.constant 0 : index
    %c0_5 = arith.constant 0 : index
    %6 = vector.load %arg3[%c0_4, %c0_5] : memref<4x8xf32, #tpu.memory_space<vmem>>, vector<4x8xf32>
    %7 = vector.shape_cast %4 : vector<1x128xf32> to vector<1x1x128xf32>
    %8 = vector.shape_cast %6 : vector<4x8xf32> to vector<4x8x1xf32>
    %9 = vector.broadcast %7 : vector<1x1x128xf32> to vector<4x8x128xf32>
    %10 = vector.broadcast %8 : vector<4x8x1xf32> to vector<4x8x128xf32>
    %11 = arith.subf %9, %10 : vector<4x8x128xf32>
    %cst_6 = arith.constant 4.000000e+00 : f32
    %12 = vector.broadcast %cst_6 : f32 to vector<4x8x128xf32>
    %13 = arith.mulf %11, %12 : vector<4x8x128xf32>
    %14 = math.tanh %13 : vector<4x8x128xf32>
    %cst_7 = arith.constant 5.000000e-01 : f32
    %15 = vector.broadcast %cst_7 : f32 to vector<4x8x128xf32>
    %16 = arith.mulf %15, %14 : vector<4x8x128xf32>
    %cst_8 = arith.constant 5.000000e-01 : f32
    %17 = vector.broadcast %cst_8 : f32 to vector<4x8x128xf32>
    %18 = arith.addf %16, %17 : vector<4x8x128xf32>
    %19 = vector.shape_cast %5 : vector<4x8xf32> to vector<4x8x1xf32>
    %20 = vector.broadcast %19 : vector<4x8x1xf32> to vector<4x8x128xf32>
    %21 = arith.mulf %20, %18 : vector<4x8x128xf32>
    %cst_9 = arith.constant dense<0.000000e+00> : vector<4x128xf32>
    %22 = vector.multi_reduction <add>, %21, %cst_9 [1] : vector<4x8x128xf32> to vector<4x128xf32>
    %cst_10 = arith.constant 1.000000e+00 : f32
    %23 = vector.broadcast %cst_10 : f32 to vector<4x128xf32>
    %24 = arith.subf %23, %22 : vector<4x128xf32>
    %cst_11 = arith.constant 1.000000e+00 : f32
    %25 = vector.broadcast %cst_11 : f32 to vector<4x128xf32>
    %26 = arith.mulf %24, %25 : vector<4x128xf32>
    %cst_12 = arith.constant 0.000000e+00 : f32
    %27 = vector.broadcast %cst_12 : f32 to vector<4x128xf32>
    %28 = arith.addf %27, %26 : vector<4x128xf32>
    %c0_13 = arith.constant 0 : index
    %c0_14 = arith.constant 0 : index
    %29 = vector.load %arg4[%c0_13, %c0_14] : memref<4x128xf32, #tpu.memory_space<vmem>>, vector<4x128xf32>
    tpu.vector_store %arg4[%c0_13, %c0_14], %28 {strides = array<i32>} : memref<4x128xf32, #tpu.memory_space<vmem>>, vector<4x128xf32>,
    return
  }
  func.func @transform_0(%arg0: i32) -> (i32, i32) {
    %c0_i32 = arith.constant 0 : i32
    %c0_i32_0 = arith.constant 0 : i32
    return %c0_i32, %arg0 : i32, i32
  }
  func.func @transform_1(%arg0: i32) -> (i32, i32) {
    %c0_i32 = arith.constant 0 : i32
    %c0_i32_0 = arith.constant 0 : i32
    %c0_i32_1 = arith.constant 0 : i32
    return %c0_i32, %c0_i32_0 : i32, i32
  }
  func.func @transform_2(%arg0: i32) -> (i32, i32) {
    %c0_i32 = arith.constant 0 : i32
    %c0_i32_0 = arith.constant 0 : i32
    %c0_i32_1 = arith.constant 0 : i32
    return %c0_i32, %c0_i32_0 : i32, i32
  }
  func.func @transform_3(%arg0: i32) -> (i32, i32) {
    %c0_i32 = arith.constant 0 : i32
    %c0_i32_0 = arith.constant 0 : i32
    return %c0_i32, %arg0 : i32, i32
  }
}

</mosaic_0001>

<llo_original>
// kernel: tpu_custom_call.1
$region0: #{tpu_custom_call.1}
  #allocation0 [shape = 'u32[]', space=smem, size = 0x4, offset = 0x4, fixed_abs, tag = 'smem constant byte address 0x4 - core index']
  #allocation1 [shape = 'u32[144,128]{1,0:T(1,128)}', space=vmem, size = 0x12000, scoped, tag = 'internal scratch']
  %s0 = inlined_call_operand.hbm [shape: f32[1,128], index: 0, kind: input, shape index: {}]
  %s1 = inlined_call_operand.hbm [shape: f32[4,8], index: 1, kind: input, shape index: {}]
  %s2 = inlined_call_operand.vmem [shape: f32[4,8], index: 2, kind: input, shape index: {}]
  %s3 = inlined_call_operand.hbm [shape: f32[4,128], index: 3, kind: output, shape index: {}]
  %s4 = sld [smem:[#allocation0]]
  $region30: #{tpu_custom_call.1} parent=0
    _
  %s6 = ssub.s32 1, %s4
  %s7 = scalar_select 0, %s6, %s4
  $region1: #{tpu_custom_call.1} parent=0
    #allocation2 [shape = 'u8[512]{0}', space=vmem, size = 0x400, scoped, tag = 'input window, operand 0, single buffered']
    #allocation3 [shape = 's32[1]{0}', space=sflag, size = 0x4, scoped, tag = 'scoped memory for tpu_custom_call.1']
    #allocation4 [shape = 's32[1]{0}', space=sflag, size = 0x4, scoped, tag = 'scoped memory for tpu_custom_call.1']
    #allocation5 [shape = 'u8[2048]{0}', space=vmem, size = 0x800, scoped, tag = 'input window, operand 1, single buffered']
    #allocation6 [shape = 's32[1]{0}', space=sflag, size = 0x4, scoped, tag = 'scoped memory for tpu_custom_call.1']
    #allocation7 [shape = 'u8[2048]{0}', space=vmem, size = 0x800, scoped, tag = 'output window, operand 0, single buffered']
    %8 = vsyncpa [#allocation3], 0
    %9 = vsyncpa [#allocation6], 0
    %10 = vsyncpa [#allocation4], 0
    // Predicated region
    $region2: #{tpu_custom_call.1} parent=1 // pred_check
      _
    $region3: #{tpu_custom_call.1} parent=1 // pred_check_branch
      %12 = sbr.rel (0) target = $region5
    $region4: #{tpu_custom_call.1} parent=1 // pred_region
      %s14 = ssub.s32 16, 16
      %15 = vsyncadd [#allocation3], %s14
      %s17 = sshll.u32 [#allocation2], 4
      %s18 = int_to_ptr.vmem [resolvable:$true] %s17
      %20 = dma.hbm_to_vmem [thread:$0]  %s0, 16, %s18, [#allocation3]
    $region5: #{tpu_custom_call.1} parent=1 // pred_fallthru
      _
    // Predicated region
    $region6: #{tpu_custom_call.1} parent=1 // pred_check
      _
    $region7: #{tpu_custom_call.1} parent=1 // pred_check_branch
      %22 = sbr.rel (0) target = $region9
    $region8: #{tpu_custom_call.1} parent=1 // pred_region
      %s24 = ssub.s32 64, 64
      %25 = vsyncadd [#allocation6], %s24
      %s27 = sshll.u32 [#allocation5], 4
      %s28 = int_to_ptr.vmem [resolvable:$true] %s27
      %30 = dma.hbm_to_vmem [thread:$0]  %s1, 64, %s28, [#allocation6]
    $region9: #{tpu_custom_call.1} parent=1 // pred_fallthru
      _
    // Predicated region
    $region10: #{tpu_custom_call.1} parent=1 // pred_check
      _
    $region11: #{tpu_custom_call.1} parent=1 // pred_check_branch
      %32 = sbr.rel (0) target = $region13
    $region12: #{tpu_custom_call.1} parent=1 // pred_region
      _
    $region13: #{tpu_custom_call.1} parent=1 // pred_fallthru
      _
    // Predicated region
    $region14: #{tpu_custom_call.1} parent=1 // pred_check
      _
    $region15: #{tpu_custom_call.1} parent=1 // pred_check_branch
      %34 = sbr.rel (0) target = $region17
    $region16: #{tpu_custom_call.1} parent=1 // pred_region
      %35 = dma.done [#allocation3], 16
    $region17: #{tpu_custom_call.1} parent=1 // pred_fallthru
      _
    // Predicated region
    $region18: #{tpu_custom_call.1} parent=1 // pred_check
      _
    $region19: #{tpu_custom_call.1} parent=1 // pred_check_branch
      %37 = sbr.rel (0) target = $region21
    $region20: #{tpu_custom_call.1} parent=1 // pred_region
      %38 = dma.done [#allocation6], 64
    $region21: #{tpu_custom_call.1} parent=1 // pred_fallthru
      _
    %v39 = vld [vmem:[#allocation2] sm:$0x1]
    %v40 = vmul.f32 %v39, 0.05
    %v41 = vld [vmem:[#allocation5] sm:$0xf]
    %v42 = vld [vmem:[%s2] sm:$0xf]
    %v43 = vlaneseq
    %v44 = vshrl.u32 %v43, 7
    %v45 = vsub.s32 0, %v44
    %v46 = vrot.slane %v42, %v45
    %48 = vbcast.lane.b32.xlu0 %v46, 256
    %v49 = vpop.permute.xlu0 %48
    %v50 = vlaneseq
    %v51 = vshrl.u32 %v50, 7
    %v52 = vsub.s32 1, %v51
    %v53 = vrot.slane %v42, %v52
    %55 = vbcast.lane.b32.xlu0 %v53, 256
    %v56 = vpop.permute.xlu0 %55
    %v57 = vlaneseq
    %v58 = vshrl.u32 %v57, 7
    %v59 = vsub.s32 2, %v58
    %v60 = vrot.slane %v42, %v59
    %62 = vbcast.lane.b32.xlu0 %v60, 256
    %v63 = vpop.permute.xlu0 %62
    %v64 = vlaneseq
    %v65 = vshrl.u32 %v64, 7
    %v66 = vsub.s32 3, %v65
    %v67 = vrot.slane %v42, %v66
    %69 = vbcast.lane.b32.xlu0 %v67, 256
    %v70 = vpop.permute.xlu0 %69
    %v72 = vlaneseq
    %v73 = vshrl.u32 %v72, 7
    %v74 = vsub.s32 0, %v73
    %v75 = vrot.slane %v40, %v74
    %v77 = vsub.f32 %v75, %v49
    %v78 = vsub.f32 %v75, %v56
    %v79 = vsub.f32 %v75, %v63
    %v80 = vsub.f32 %v75, %v70
    %v81 = vmul.f32 %v77, 4.0
    %v82 = vmul.f32 %v78, 4.0
    %v83 = vmul.f32 %v79, 4.0
    %v84 = vmul.f32 %v80, 4.0
    %v85 = vtanh.pop %v81
    %v86 = vtanh.pop %v82
    %v87 = vtanh.pop %v83
    %v88 = vtanh.pop %v84
    %v89 = vmul.f32 %v85, 0.5
    %v90 = vmul.f32 %v86, 0.5
    %v91 = vmul.f32 %v87, 0.5
    %v92 = vmul.f32 %v88, 0.5
    %v93 = vadd.f32 %v89, 0.5
    %v94 = vadd.f32 %v90, 0.5
    %v95 = vadd.f32 %v91, 0.5
    %v96 = vadd.f32 %v92, 0.5
    %v97 = vlaneseq
    %v98 = vshrl.u32 %v97, 7
    %v99 = vsub.s32 0, %v98
    %v100 = vrot.slane %v41, %v99
    %102 = vbcast.lane.b32.xlu0 %v100, 256
    %v103 = vpop.permute.xlu0 %102
    %v104 = vlaneseq
    %v105 = vshrl.u32 %v104, 7
    %v106 = vsub.s32 1, %v105
    %v107 = vrot.slane %v41, %v106
    %109 = vbcast.lane.b32.xlu0 %v107, 256
    %v110 = vpop.permute.xlu0 %109
    %v111 = vlaneseq
    %v112 = vshrl.u32 %v111, 7
    %v113 = vsub.s32 2, %v112
    %v114 = vrot.slane %v41, %v113
    %116 = vbcast.lane.b32.xlu0 %v114, 256
    %v117 = vpop.permute.xlu0 %116
    %v118 = vlaneseq
    %v119 = vshrl.u32 %v118, 7
    %v120 = vsub.s32 3, %v119
    %v121 = vrot.slane %v41, %v120
    %123 = vbcast.lane.b32.xlu0 %v121, 256
    %v124 = vpop.permute.xlu0 %123
    %v125 = vmul.f32 %v103, %v93
    %v126 = vmul.f32 %v110, %v94
    %v127 = vmul.f32 %v117, %v95
    %v128 = vmul.f32 %v124, %v96
    %v129 = vrot.slane %v125, 4
    %v130 = vadd.f32 %v125, %v129
    %v131 = vrot.slane %v130, 2
    %v132 = vadd.f32 %v130, %v131
    %v133 = vrot.slane %v132, 1
    %v134 = vadd.f32 %v132, %v133
    %v135 = vrot.slane %v126, 4
    %v136 = vadd.f32 %v126, %v135
    %v137 = vrot.slane %v136, 2
    %v138 = vadd.f32 %v136, %v137
    %v139 = vrot.slane %v138, 1
    %v140 = vadd.f32 %v138, %v139
    %v141 = vrot.slane %v127, 4
    %v142 = vadd.f32 %v127, %v141
    %v143 = vrot.slane %v142, 2
    %v144 = vadd.f32 %v142, %v143
    %v145 = vrot.slane %v144, 1
    %v146 = vadd.f32 %v144, %v145
    %v147 = vrot.slane %v128, 4
    %v148 = vadd.f32 %v128, %v147
    %v149 = vrot.slane %v148, 2
    %v150 = vadd.f32 %v148, %v149
    %v151 = vrot.slane %v150, 1
    %v152 = vadd.f32 %v150, %v151
    %v153 = vsub.f32 1.0, %v134
    %v154 = vsub.f32 1.0, %v140
    %v155 = vsub.f32 1.0, %v146
    %v156 = vsub.f32 1.0, %v152
    %v157 = vadd.f32 %v153, 0.0
    %v158 = vadd.f32 %v154, 0.0
    %v159 = vadd.f32 %v155, 0.0
    %v160 = vadd.f32 %v156, 0.0
    %vm165 = vcmask 1041409
    %v166 = vsel %vm165, %v158, %v157
    %vm167 = vcmask 1042434
    %v168 = vsel %vm167, %v159, %v166
    %vm169 = vcmask 1043459
    %v170 = vsel %vm169, %v160, %v168
    %172 = vst [vmem:[#allocation7] sm:$0xf] %v170
    // Predicated region
    $region22: #{tpu_custom_call.1} parent=1 // pred_check
      _
    $region23: #{tpu_custom_call.1} parent=1 // pred_check_branch
      %174 = sbr.rel (0) target = $region25
    $region24: #{tpu_custom_call.1} parent=1 // pred_region
      %s176 = ssub.s32 64, 64
      %177 = vsyncadd [#allocation4], %s176
      %s179 = sshll.u32 [#allocation7], 4
      %s180 = int_to_ptr.vmem [resolvable:$true] %s179
      %182 = dma.vmem_to_hbm [thread:$0]  %s180, 64, %s3, [#allocation4]
    $region25: #{tpu_custom_call.1} parent=1 // pred_fallthru
      _
    // Predicated region
    $region26: #{tpu_custom_call.1} parent=1 // pred_check
      _
    $region27: #{tpu_custom_call.1} parent=1 // pred_check_branch
      %184 = sbr.rel (0) target = $region29
    $region28: #{tpu_custom_call.1} parent=1 // pred_region
      %185 = dma.done [#allocation4], 64
    $region29: #{tpu_custom_call.1} parent=1 // pred_fallthru
      _
    %186 = vsyncpa [#allocation3], 1
    %187 = vsyncpa [#allocation6], 1
    %188 = vsyncpa [#allocation4], 1

</llo_original>
